<compile_context>
chip_gen: v7x
topology: tpu7x:2x2x1
jax: 0.10.0
libtpu: 0.0.40
codegen_flags: <defaults>
</compile_context>

<pallas_src>
import functools

import jax
import jax.numpy as jnp
from jax.experimental import pallas as pl
from jax.experimental.pallas import tpu as pltpu


def _adaptive_depth_kernel(x_ref, s_ref, w_ref, ns_ref, ret_ref):
    dim = ns_ref.shape[-1]
    x = x_ref[...]
    s = s_ref[...].astype(jnp.float32)

    # One fused MXU matmul per node tile: (tile_n, dim) @ (dim, 4*dim) -> f32.
    z = jnp.dot(x, w_ref[...], preferred_element_type=jnp.float32)

    # Activate the three sigmoid gates in one EUP pass over the first 3*dim
    # lanes, tanh over the last dim lanes, then take static lane slices
    # (free when dim % 128 == 0; a cheap lane-select otherwise).
    sig = jax.nn.sigmoid(z[:, : 3 * dim])
    ii = sig[:, 0 * dim:1 * dim]     # torch: sigmoid(Wf(x)) -> "ii" (naming kept as-is)
    fi = sig[:, 1 * dim:2 * dim]     # torch: sigmoid(Wi(x)) -> "fi"
    oi = sig[:, 2 * dim:3 * dim]     # torch: sigmoid(Wo(x)) -> "oi"
    c_head = jnp.tanh(z[:, 3 * dim:4 * dim])

    next_states = fi * s + ii * c_head
    ret = jnp.tanh(next_states) * oi

    ns_ref[...] = next_states.astype(ns_ref.dtype)
    ret_ref[...] = ret.astype(ret_ref.dtype)


def prepare_gate_weights(wf, wi, wo, wc):
    """Fuse the four torch Linear weights into one pre-transposed (dim, 4*dim) RHS.

    Call once outside the per-step hot path (weights are static per layer)."""
    return jnp.concatenate([wf.T, wi.T, wo.T, wc.T], axis=1)


def _choose_tile_n(n, dim, itemsize, budget_bytes=20 * 1024 * 1024):
    """Largest node tile that keeps the pipeline inside a conservative VMEM budget."""
    weight_bytes = 2 * dim * (4 * dim) * itemsize            # double-buffered fused W
    # per row: double-buffered x/states/next_states/ret tiles + f32 matmul/act temps
    per_row = 2 * dim * 4 * itemsize + 32 * dim
    avail = max(budget_bytes - weight_bytes, per_row * 8)
    cap = int(min(max(8, avail // per_row), 1024))
    if n <= cap:
        return n
    d = cap - (cap % 8)
    while d >= 8:                                            # divisor of n, multiple of 8
        if n % d == 0:
            return d
        d -= 8
    return n                                                 # fallback: one big tile


@functools.partial(jax.jit, static_argnames=("tile_n", "donate_states"))
def adaptive_depth_apply(inputs, states, w_all, *, tile_n, donate_states=False):
    n, dim = inputs.shape
    assert w_all.shape == (dim, 4 * dim)
    assert n % tile_n == 0

    node_spec = pl.BlockSpec((tile_n, dim), lambda i: (i, 0))
    w_spec = pl.BlockSpec((dim, 4 * dim), lambda i: (0, 0))

    kwargs = {}
    if donate_states:
        # Alias states (input index 1) to next_states (output index 0) when the
        # caller updates state in place in the GeniePath depth loop.
        kwargs["input_output_aliases"] = {1: 0}

    next_states, ret = pl.pallas_call(
        _adaptive_depth_kernel,
        out_shape=(
            jax.ShapeDtypeStruct((n, dim), states.dtype),   # keep state precision
            jax.ShapeDtypeStruct((n, dim), inputs.dtype),
        ),
        grid_spec=pltpu.PrefetchScalarGridSpec(
            num_scalar_prefetch=0,
            grid=(n // tile_n,),
            in_specs=[node_spec, node_spec, w_spec],
            out_specs=[node_spec, node_spec],
        ),
        compiler_params=pltpu.CompilerParams(
            dimension_semantics=("parallel",),
            vmem_limit_bytes=32 * 1024 * 1024,
        ),
        **kwargs,
    )(inputs, states, w_all)
    return next_states, ret


def adaptive_depth_func(inputs, states, wf, wi, wo, wc, *, tile_n=None):
    w_all = prepare_gate_weights(wf, wi, wo, wc)
    if tile_n is None:
        tile_n = _choose_tile_n(inputs.shape[0], inputs.shape[1],
                                jnp.dtype(inputs.dtype).itemsize)
    return adaptive_depth_apply(inputs, states, w_all, tile_n=tile_n)


def _xavier_uniform(key, dim, dtype=jnp.float32):
    # torch.nn.init.xavier_uniform_ for a (dim, dim) Linear weight.
    bound = (6.0 / (dim + dim)) ** 0.5
    return jax.random.uniform(key, (dim, dim), dtype=dtype,
                              minval=-bound, maxval=bound)


def _reference(inputs, states, wf, wi, wo, wc):
    ii = jax.nn.sigmoid(inputs @ wf.T)
    fi = jax.nn.sigmoid(inputs @ wi.T)
    oi = jax.nn.sigmoid(inputs @ wo.T)
    c_head = jnp.tanh(inputs @ wc.T)
    next_states = fi * states + ii * c_head
    ret = jnp.tanh(next_states) * oi
    return next_states, ret


if __name__ == "__main__":
    n_node, dim = 64, 32
    key = jax.random.PRNGKey(0)
    k_x, k_s, k_wf, k_wi, k_wo, k_wc = jax.random.split(key, 6)

    inputs = jax.random.normal(k_x, (n_node, dim), dtype=jnp.float32)
    states = jax.random.normal(k_s, (n_node, dim), dtype=jnp.float32)
    wf = _xavier_uniform(k_wf, dim)
    wi = _xavier_uniform(k_wi, dim)
    wo = _xavier_uniform(k_wo, dim)
    wc = _xavier_uniform(k_wc, dim)

    ref_ns, ref_ret = _reference(inputs, states, wf, wi, wo, wc)

    # Auto tile (whole 64-row array in one step -> grid=(1,)).
    next_states, ret = adaptive_depth_func(inputs, states, wf, wi, wo, wc)
    jax.block_until_ready((next_states, ret))
    assert jnp.allclose(next_states, ref_ns, atol=1e-5, rtol=1e-5)
    assert jnp.allclose(ret, ref_ret, atol=1e-5, rtol=1e-5)

    # Also exercise the multi-step grid path (tile_n=16 -> grid=(4,)).
    ns2, ret2 = adaptive_depth_func(inputs, states, wf, wi, wo, wc, tile_n=16)
    jax.block_until_ready((ns2, ret2))
    assert jnp.allclose(ns2, ref_ns, atol=1e-5, rtol=1e-5)
    assert jnp.allclose(ret2, ref_ret, atol=1e-5, rtol=1e-5)

    print("KERNEL_OK")
</pallas_src>

<mosaic_0001>
module attributes {stable_mosaic.version = 11 : i64} {
  func.func @_adaptive_depth_kernel(%arg0: i32, %arg1: memref<64x32xf32, #tpu.memory_space<vmem>>, %arg2: memref<64x32xf32, #tpu.memory_space<vmem>>, %arg3: memref<32x128xf32, #tpu.memory_space<vmem>>, %arg4: memref<64x32xf32, #tpu.memory_space<vmem>>, %arg5: memref<64x32xf32, #tpu.memory_space<vmem>>) attributes {dimension_semantics = [#tpu.dimension_semantics<parallel>], iteration_bounds = array<i64: 1>, scalar_prefetch = 0 : i64, scratch_operands = 0 : i64, tpu.core_type = #tpu.core_type<tc>, window_params = [{transform_indices = @transform_0, window_bounds = array<i64: 64, 32>}, {transform_indices = @transform_1, window_bounds = array<i64: 64, 32>}, {pipeline_mode = #tpu.pipeline_mode<synchronous>, transform_indices = @transform_2, window_bounds = array<i64: 32, 128>}, {transform_indices = @transform_3, window_bounds = array<i64: 64, 32>}, {transform_indices = @transform_4, window_bounds = array<i64: 64, 32>}]} {
    %c0 = arith.constant 0 : index
    %c0_0 = arith.constant 0 : index
    %0 = vector.load %arg1[%c0, %c0_0] : memref<64x32xf32, #tpu.memory_space<vmem>>, vector<64x32xf32>
    %c0_1 = arith.constant 0 : index
    %c0_2 = arith.constant 0 : index
    %1 = vector.load %arg2[%c0_1, %c0_2] : memref<64x32xf32, #tpu.memory_space<vmem>>, vector<64x32xf32>
    %c0_3 = arith.constant 0 : index
    %c0_4 = arith.constant 0 : index
    %2 = vector.load %arg3[%c0_3, %c0_4] : memref<32x128xf32, #tpu.memory_space<vmem>>, vector<32x128xf32>
    %cst = arith.constant dense<0.000000e+00> : vector<64x128xf32>
    %3 = tpu.matmul %0, %2, %cst {dimension_numbers = #tpu.dot_dimension_numbers<[1], [0], [0], [1], [0, 0, 1, 1], [], []>} : vector<64x32xf32>, vector<32x128xf32>, vector<64x128xf32> -> vector<64x128xf32>
    %4 = vector.extract_strided_slice %3 {offsets = [0, 0], sizes = [64, 96], strides = [1, 1]} : vector<64x128xf32> to vector<64x96xf32>
    %5 = arith.negf %4 : vector<64x96xf32>
    %6 = math.exp %5 : vector<64x96xf32>
    %cst_5 = arith.constant 1.000000e+00 : f32
    %7 = vector.broadcast %cst_5 : f32 to vector<64x96xf32>
    %8 = arith.addf %7, %6 : vector<64x96xf32>
    %9 = arith.divf %7, %8 : vector<64x96xf32>
    %10 = vector.extract_strided_slice %9 {offsets = [0, 0], sizes = [64, 32], strides = [1, 1]} : vector<64x96xf32> to vector<64x32xf32>
    %11 = vector.extract_strided_slice %9 {offsets = [0, 32], sizes = [64, 32], strides = [1, 1]} : vector<64x96xf32> to vector<64x32xf32>
    %12 = vector.extract_strided_slice %9 {offsets = [0, 64], sizes = [64, 32], strides = [1, 1]} : vector<64x96xf32> to vector<64x32xf32>
    %13 = vector.extract_strided_slice %3 {offsets = [0, 96], sizes = [64, 32], strides = [1, 1]} : vector<64x128xf32> to vector<64x32xf32>
    %14 = math.tanh %13 : vector<64x32xf32>
    %15 = arith.mulf %11, %1 : vector<64x32xf32>
    %16 = arith.mulf %10, %14 : vector<64x32xf32>
    %17 = arith.addf %15, %16 : vector<64x32xf32>
    %18 = math.tanh %17 : vector<64x32xf32>
    %19 = arith.mulf %18, %12 : vector<64x32xf32>
    %c0_6 = arith.constant 0 : index
    %c0_7 = arith.constant 0 : index
    %20 = vector.load %arg4[%c0_6, %c0_7] : memref<64x32xf32, #tpu.memory_space<vmem>>, vector<64x32xf32>
    tpu.vector_store %arg4[%c0_6, %c0_7], %17 {strides = array<i32>} : memref<64x32xf32, #tpu.memory_space<vmem>>, vector<64x32xf32>,
    %c0_8 = arith.constant 0 : index
    %c0_9 = arith.constant 0 : index
    %21 = vector.load %arg5[%c0_8, %c0_9] : memref<64x32xf32, #tpu.memory_space<vmem>>, vector<64x32xf32>
    tpu.vector_store %arg5[%c0_8, %c0_9], %19 {strides = array<i32>} : memref<64x32xf32, #tpu.memory_space<vmem>>, vector<64x32xf32>,
    return
  }
  func.func @transform_0(%arg0: i32) -> (i32, i32) {
    %c0_i32 = arith.constant 0 : i32
    %c0_i32_0 = arith.constant 0 : i32
    return %arg0, %c0_i32 : i32, i32
  }
  func.func @transform_1(%arg0: i32) -> (i32, i32) {
    %c0_i32 = arith.constant 0 : i32
    %c0_i32_0 = arith.constant 0 : i32
    return %arg0, %c0_i32 : i32, i32
  }
  func.func @transform_2(%arg0: i32) -> (i32, i32) {
    %c0_i32 = arith.constant 0 : i32
    %c0_i32_0 = arith.constant 0 : i32
    %c0_i32_1 = arith.constant 0 : i32
    return %c0_i32, %c0_i32_0 : i32, i32
  }
  func.func @transform_3(%arg0: i32) -> (i32, i32) {
    %c0_i32 = arith.constant 0 : i32
    %c0_i32_0 = arith.constant 0 : i32
    return %arg0, %c0_i32 : i32, i32
  }
  func.func @transform_4(%arg0: i32) -> (i32, i32) {
    %c0_i32 = arith.constant 0 : i32
    %c0_i32_0 = arith.constant 0 : i32
    return %arg0, %c0_i32 : i32, i32
  }
}

</mosaic_0001>

<llo_original>
// kernel: adaptive_depth_apply.1
$region0: #{adaptive_depth_apply.1}
  #allocation0 [shape = 'u32[]', space=smem, size = 0x4, offset = 0x4, fixed_abs, tag = 'smem constant byte address 0x4 - core index']
  #allocation1 [shape = 'u32[144,128]{1,0:T(1,128)}', space=vmem, size = 0x12000, scoped, tag = 'internal scratch']
  %s0 = inlined_call_operand.vmem [shape: f32[64,32], index: 0, kind: input, shape index: {}]
  %s1 = inlined_call_operand.vmem [shape: f32[64,32], index: 1, kind: input, shape index: {}]
  %s2 = inlined_call_operand.vmem [shape: f32[32,128], index: 2, kind: input, shape index: {}]
  %s3 = inlined_call_operand.vmem [shape: f32[64,32], index: 3, kind: output, shape index: {0}]
  %s4 = inlined_call_operand.vmem [shape: f32[64,32], index: 4, kind: output, shape index: {1}]
  %5 = xla_tuple %s3, %s4
  %s6 = sld [smem:[#allocation0]]
  $region30: #{adaptive_depth_apply.1} parent=0
    _
  %s8 = ssub.s32 1, %s6
  %s9 = scalar_select 0, %s8, %s6
  // Predicated region
  $region2: #{adaptive_depth_apply.1} parent=0 // pred_check
    _
  $region3: #{adaptive_depth_apply.1} parent=0 // pred_check_branch
    %11 = sbr.rel (0) target = $region5
  $region4: #{adaptive_depth_apply.1} parent=0 // pred_region
    _
  $region5: #{adaptive_depth_apply.1} parent=0 // pred_fallthru
    _
  // Predicated region
  $region6: #{adaptive_depth_apply.1} parent=0 // pred_check
    _
  $region7: #{adaptive_depth_apply.1} parent=0 // pred_check_branch
    %13 = sbr.rel (0) target = $region9
  $region8: #{adaptive_depth_apply.1} parent=0 // pred_region
    _
  $region9: #{adaptive_depth_apply.1} parent=0 // pred_fallthru
    _
  // Predicated region
  $region10: #{adaptive_depth_apply.1} parent=0 // pred_check
    _
  $region11: #{adaptive_depth_apply.1} parent=0 // pred_check_branch
    %15 = sbr.rel (0) target = $region13
  $region12: #{adaptive_depth_apply.1} parent=0 // pred_region
    _
  $region13: #{adaptive_depth_apply.1} parent=0 // pred_fallthru
    _
  %v16 = vld [vmem:[%s0] sm:$0xff]
  %v17 = vld [vmem:[%s0 + $0x8] sm:$0xff]
  %v18 = vld [vmem:[%s0 + $0x10] sm:$0xff]
  %v19 = vld [vmem:[%s0 + $0x18] sm:$0xff]
  %v20 = vld [vmem:[%s0 + $0x20] sm:$0xff]
  %v21 = vld [vmem:[%s0 + $0x28] sm:$0xff]
  %v22 = vld [vmem:[%s0 + $0x30] sm:$0xff]
  %v23 = vld [vmem:[%s0 + $0x38] sm:$0xff]
  %v24 = vld [vmem:[%s1] sm:$0xff]
  %v25 = vld [vmem:[%s1 + $0x8] sm:$0xff]
  %v26 = vld [vmem:[%s1 + $0x10] sm:$0xff]
  %v27 = vld [vmem:[%s1 + $0x18] sm:$0xff]
  %v28 = vld [vmem:[%s1 + $0x20] sm:$0xff]
  %v29 = vld [vmem:[%s1 + $0x28] sm:$0xff]
  %v30 = vld [vmem:[%s1 + $0x30] sm:$0xff]
  %v31 = vld [vmem:[%s1 + $0x38] sm:$0xff]
  %v32 = vld [vmem:[%s2] sm:$0xff]
  %v33 = vld [vmem:[%s2 + $0x8] sm:$0xff]
  %v34 = vld [vmem:[%s2 + $0x10] sm:$0xff]
  %v35 = vld [vmem:[%s2 + $0x18] sm:$0xff]
  %vm36 = vcmask 261120
  %v38 = vsel %vm36, %v16, 0
  %v41 = vsel %vm36, %v17, 0
  %v44 = vsel %vm36, %v18, 0
  %v47 = vsel %vm36, %v19, 0
  %v50 = vsel %vm36, %v20, 0
  %v53 = vsel %vm36, %v21, 0
  %v56 = vsel %vm36, %v22, 0
  %v59 = vsel %vm36, %v23, 0
  %61 = vmatprep.subr.mxu0 0.0
  %62 = vmatpush1.msra.mxu0 %v32
  %63 = vmatprep.subr.mxu0 0.0
  %64 = vmatpush1.msra.mxu0 %v33
  %65 = vmatprep.subr.mxu0 0.0
  %66 = vmatpush1.msra.mxu0 %v34
  %67 = vmatprep.subr.mxu0 0.0
  %68 = vmatpush1.msra.mxu0 %v35
  %69 = vmatprep.subr.mxu0 0.0
  %70 = vmatpush1.msra.mxu0 0.0
  %71 = vmatprep.subr.mxu0 0.0
  %72 = vmatpush1.msra.mxu0 0.0
  %73 = vmatprep.subr.mxu0 0.0
  %74 = vmatpush1.msra.mxu0 0.0
  %75 = vmatprep.subr.mxu0 0.0
  %76 = vmatpush1.msra.mxu0 0.0
  %77 = vmatprep.subr.mxu0 0.0
  %78 = vmatpush1.msra.mxu0 0.0
  %79 = vmatprep.subr.mxu0 0.0
  %80 = vmatpush1.msra.mxu0 0.0
  %81 = vmatprep.subr.mxu0 0.0
  %82 = vmatpush1.msra.mxu0 0.0
  %83 = vmatprep.subr.mxu0 0.0
  %84 = vmatpush1.msra.mxu0 0.0
  %85 = vmatprep.subr.mxu0 0.0
  %86 = vmatpush1.msra.mxu0 0.0
  %87 = vmatprep.subr.mxu0 0.0
  %88 = vmatpush1.msra.mxu0 0.0
  %89 = vmatprep.subr.mxu0 0.0
  %90 = vmatpush1.msra.mxu0 0.0
  %91 = vmatprep.subr.mxu0 0.0
  %92 = vmatpush1.msra.mxu0 0.0
  %93 = vmatprep.subr.mxu0 0.0
  %94 = vmatpush1.msra.mxu0 0.0
  %95 = vmatprep.subr.mxu0 0.0
  %96 = vmatpush1.msra.mxu0 0.0
  %97 = vmatprep.subr.mxu0 0.0
  %98 = vmatpush1.msra.mxu0 0.0
  %99 = vmatprep.subr.mxu0 0.0
  %100 = vmatpush1.msra.mxu0 0.0
  %101 = vmatprep.subr.mxu0 0.0
  %102 = vmatpush1.msra.mxu0 0.0
  %103 = vmatprep.subr.mxu0 0.0
  %104 = vmatpush1.msra.mxu0 0.0
  %105 = vmatprep.subr.mxu0 0.0
  %106 = vmatpush1.msra.mxu0 0.0
  %107 = vmatprep.subr.mxu0 0.0
  %108 = vmatpush1.msra.mxu0 0.0
  %109 = vmatprep.subr.mxu0 0.0
  %110 = vmatpush1.msra.mxu0 0.0
  %111 = vmatprep.subr.mxu0 0.0
  %112 = vmatpush1.msra.mxu0 0.0
  %113 = vmatprep.subr.mxu0 0.0
  %114 = vmatpush1.msra.mxu0 0.0
  %115 = vmatprep.subr.mxu0 0.0
  %116 = vmatpush1.msra.mxu0 0.0
  %117 = vmatprep.subr.mxu0 0.0
  %118 = vmatpush1.msra.mxu0 0.0
  %119 = vmatprep.subr.mxu0 0.0
  %120 = vmatpush1.msra.mxu0 0.0
  %121 = vmatprep.subr.mxu0 0.0
  %122 = vmatpush1.msra.mxu0 0.0
  %123 = vmatprep.subr.mxu0 0.0
  %124 = vmatpush1.msra.mxu0 0.0
  %125 = vmatprep.mubr.f32.mxu0 0.0
  %126 = vmatmul.mubr.f32.gmra.mrb[0].mxu0 %v38
  %v127 = vpop.f32.mrb[0].mxu0
  %v128 = vadd.f32 0.0, %v127
  %v129 = vpop.f32.mrb[0].mxu0
  %130 = vmatprep.mubr.f32.mxu0 0.0
  %131 = vmatmul.mubr.f32.gmra.mrb[0].mxu0 %v41
  %v132 = vpop.f32.mrb[0].mxu0
  %v133 = vadd.f32 0.0, %v132
  %v134 = vpop.f32.mrb[0].mxu0
  %135 = vmatprep.mubr.f32.mxu0 0.0
  %136 = vmatmul.mubr.f32.gmra.mrb[0].mxu0 %v44
  %v137 = vpop.f32.mrb[0].mxu0
  %v138 = vadd.f32 0.0, %v137
  %v139 = vpop.f32.mrb[0].mxu0
  %140 = vmatprep.mubr.f32.mxu0 0.0
  %141 = vmatmul.mubr.f32.gmra.mrb[0].mxu0 %v47
  %v142 = vpop.f32.mrb[0].mxu0
  %v143 = vadd.f32 0.0, %v142
  %v144 = vpop.f32.mrb[0].mxu0
  %145 = vmatprep.mubr.f32.mxu0 0.0
  %146 = vmatmul.mubr.f32.gmra.mrb[0].mxu0 %v50
  %v147 = vpop.f32.mrb[0].mxu0
  %v148 = vadd.f32 0.0, %v147
  %v149 = vpop.f32.mrb[0].mxu0
  %150 = vmatprep.mubr.f32.mxu0 0.0
  %151 = vmatmul.mubr.f32.gmra.mrb[0].mxu0 %v53
  %v152 = vpop.f32.mrb[0].mxu0
  %v153 = vadd.f32 0.0, %v152
  %v154 = vpop.f32.mrb[0].mxu0
  %155 = vmatprep.mubr.f32.mxu0 0.0
  %156 = vmatmul.mubr.f32.gmra.mrb[0].mxu0 %v56
  %v157 = vpop.f32.mrb[0].mxu0
  %v158 = vadd.f32 0.0, %v157
  %v159 = vpop.f32.mrb[0].mxu0
  %160 = vmatprep.mubr.f32.mxu0 0.0
  %161 = vmatmul.mubr.f32.gmra.mrb[0].mxu0 %v59
  %v162 = vpop.f32.mrb[0].mxu0
  %v163 = vadd.f32 0.0, %v162
  %v164 = vpop.f32.mrb[0].mxu0
  %165 = vdwg.mxu0
  %v166 = vxor.u32 %v128, 2147483648
  %v167 = vxor.u32 %v133, 2147483648
  %v168 = vxor.u32 %v138, 2147483648
  %v169 = vxor.u32 %v143, 2147483648
  %v170 = vxor.u32 %v148, 2147483648
  %v171 = vxor.u32 %v153, 2147483648
  %v172 = vxor.u32 %v158, 2147483648
  %v173 = vxor.u32 %v163, 2147483648
  %v174 = vmul.f32 %v166, 1.442695
  %v175 = vpow.pop %v174
  %v176 = vmul.f32 %v167, 1.442695
  %v177 = vpow.pop %v176
  %v178 = vmul.f32 %v168, 1.442695
  %v179 = vpow.pop %v178
  %v180 = vmul.f32 %v169, 1.442695
  %v181 = vpow.pop %v180
  %v182 = vmul.f32 %v170, 1.442695
  %v183 = vpow.pop %v182
  %v184 = vmul.f32 %v171, 1.442695
  %v185 = vpow.pop %v184
  %v186 = vmul.f32 %v172, 1.442695
  %v187 = vpow.pop %v186
  %v188 = vmul.f32 %v173, 1.442695
  %v189 = vpow.pop %v188
  %v190 = vadd.f32 %v175, 1.0
  %v191 = vadd.f32 %v177, 1.0
  %v192 = vadd.f32 %v179, 1.0
  %v193 = vadd.f32 %v181, 1.0
  %v194 = vadd.f32 %v183, 1.0
  %v195 = vadd.f32 %v185, 1.0
  %v196 = vadd.f32 %v187, 1.0
  %v197 = vadd.f32 %v189, 1.0
  %v198 = vrcp.pop %v190
  %v199 = vmul.f32 1.0, %v198
  %v200 = vrcp.pop %v191
  %v201 = vmul.f32 1.0, %v200
  %v202 = vrcp.pop %v192
  %v203 = vmul.f32 1.0, %v202
  %v204 = vrcp.pop %v193
  %v205 = vmul.f32 1.0, %v204
  %v206 = vrcp.pop %v194
  %v207 = vmul.f32 1.0, %v206
  %v208 = vrcp.pop %v195
  %v209 = vmul.f32 1.0, %v208
  %v210 = vrcp.pop %v196
  %v211 = vmul.f32 1.0, %v210
  %v212 = vrcp.pop %v197
  %v213 = vmul.f32 1.0, %v212
  %v214 = vtanh.pop %v128
  %v215 = vtanh.pop %v133
  %v216 = vtanh.pop %v138
  %v217 = vtanh.pop %v143
  %v218 = vtanh.pop %v148
  %v219 = vtanh.pop %v153
  %v220 = vtanh.pop %v158
  %v221 = vtanh.pop %v163
  %230 = vrot.lane.b32.xlu0 %v24, 32
  %v231 = vpop.permute.xlu0 %230
  %232 = vrot.lane.b32.xlu0 %v25, 32
  %v233 = vpop.permute.xlu0 %232
  %234 = vrot.lane.b32.xlu0 %v26, 32
  %v235 = vpop.permute.xlu0 %234
  %236 = vrot.lane.b32.xlu0 %v27, 32
  %v237 = vpop.permute.xlu0 %236
  %238 = vrot.lane.b32.xlu0 %v28, 32
  %v239 = vpop.permute.xlu0 %238
  %240 = vrot.lane.b32.xlu0 %v29, 32
  %v241 = vpop.permute.xlu0 %240
  %242 = vrot.lane.b32.xlu0 %v30, 32
  %v243 = vpop.permute.xlu0 %242
  %244 = vrot.lane.b32.xlu0 %v31, 32
  %v245 = vpop.permute.xlu0 %244
  %v254 = vmul.f32 %v199, %v231
  %v255 = vmul.f32 %v201, %v233
  %v256 = vmul.f32 %v203, %v235
  %v257 = vmul.f32 %v205, %v237
  %v258 = vmul.f32 %v207, %v239
  %v259 = vmul.f32 %v209, %v241
  %v260 = vmul.f32 %v211, %v243
  %v261 = vmul.f32 %v213, %v245
  %270 = vrot.lane.b32.xlu0 %v214, 32
  %v271 = vpop.permute.xlu0 %270
  %272 = vrot.lane.b32.xlu0 %v215, 32
  %v273 = vpop.permute.xlu0 %272
  %274 = vrot.lane.b32.xlu0 %v216, 32
  %v275 = vpop.permute.xlu0 %274
  %276 = vrot.lane.b32.xlu0 %v217, 32
  %v277 = vpop.permute.xlu0 %276
  %278 = vrot.lane.b32.xlu0 %v218, 32
  %v279 = vpop.permute.xlu0 %278
  %280 = vrot.lane.b32.xlu0 %v219, 32
  %v281 = vpop.permute.xlu0 %280
  %282 = vrot.lane.b32.xlu0 %v220, 32
  %v283 = vpop.permute.xlu0 %282
  %284 = vrot.lane.b32.xlu0 %v221, 32
  %v285 = vpop.permute.xlu0 %284
  %v294 = vmul.f32 %v199, %v271
  %v295 = vmul.f32 %v201, %v273
  %v296 = vmul.f32 %v203, %v275
  %v297 = vmul.f32 %v205, %v277
  %v298 = vmul.f32 %v207, %v279
  %v299 = vmul.f32 %v209, %v281
  %v300 = vmul.f32 %v211, %v283
  %v301 = vmul.f32 %v213, %v285
  %310 = vrot.lane.b32.xlu0 %v294, 32
  %v311 = vpop.permute.xlu0 %310
  %312 = vrot.lane.b32.xlu0 %v295, 32
  %v313 = vpop.permute.xlu0 %312
  %314 = vrot.lane.b32.xlu0 %v296, 32
  %v315 = vpop.permute.xlu0 %314
  %316 = vrot.lane.b32.xlu0 %v297, 32
  %v317 = vpop.permute.xlu0 %316
  %318 = vrot.lane.b32.xlu0 %v298, 32
  %v319 = vpop.permute.xlu0 %318
  %320 = vrot.lane.b32.xlu0 %v299, 32
  %v321 = vpop.permute.xlu0 %320
  %322 = vrot.lane.b32.xlu0 %v300, 32
  %v323 = vpop.permute.xlu0 %322
  %324 = vrot.lane.b32.xlu0 %v301, 32
  %v325 = vpop.permute.xlu0 %324
  %v334 = vadd.f32 %v254, %v311
  %v335 = vadd.f32 %v255, %v313
  %v336 = vadd.f32 %v256, %v315
  %v337 = vadd.f32 %v257, %v317
  %v338 = vadd.f32 %v258, %v319
  %v339 = vadd.f32 %v259, %v321
  %v340 = vadd.f32 %v260, %v323
  %v341 = vadd.f32 %v261, %v325
  %v342 = vtanh.pop %v334
  %v343 = vtanh.pop %v335
  %v344 = vtanh.pop %v336
  %v345 = vtanh.pop %v337
  %v346 = vtanh.pop %v338
  %v347 = vtanh.pop %v339
  %v348 = vtanh.pop %v340
  %v349 = vtanh.pop %v341
  %358 = vrot.lane.b32.xlu0 %v199, 96
  %v359 = vpop.permute.xlu0 %358
  %360 = vrot.lane.b32.xlu0 %v201, 96
  %v361 = vpop.permute.xlu0 %360
  %362 = vrot.lane.b32.xlu0 %v203, 96
  %v363 = vpop.permute.xlu0 %362
  %364 = vrot.lane.b32.xlu0 %v205, 96
  %v365 = vpop.permute.xlu0 %364
  %366 = vrot.lane.b32.xlu0 %v207, 96
  %v367 = vpop.permute.xlu0 %366
  %368 = vrot.lane.b32.xlu0 %v209, 96
  %v369 = vpop.permute.xlu0 %368
  %370 = vrot.lane.b32.xlu0 %v211, 96
  %v371 = vpop.permute.xlu0 %370
  %372 = vrot.lane.b32.xlu0 %v213, 96
  %v373 = vpop.permute.xlu0 %372
  %v382 = vmul.f32 %v342, %v359
  %v383 = vmul.f32 %v343, %v361
  %v384 = vmul.f32 %v344, %v363
  %v385 = vmul.f32 %v345, %v365
  %v386 = vmul.f32 %v346, %v367
  %v387 = vmul.f32 %v347, %v369
  %v388 = vmul.f32 %v348, %v371
  %v389 = vmul.f32 %v349, %v373
  %398 = vrot.lane.b32.xlu0 %v334, 96
  %v399 = vpop.permute.xlu0 %398
  %400 = vrot.lane.b32.xlu0 %v335, 96
  %v401 = vpop.permute.xlu0 %400
  %402 = vrot.lane.b32.xlu0 %v336, 96
  %v403 = vpop.permute.xlu0 %402
  %404 = vrot.lane.b32.xlu0 %v337, 96
  %v405 = vpop.permute.xlu0 %404
  %406 = vrot.lane.b32.xlu0 %v338, 96
  %v407 = vpop.permute.xlu0 %406
  %408 = vrot.lane.b32.xlu0 %v339, 96
  %v409 = vpop.permute.xlu0 %408
  %410 = vrot.lane.b32.xlu0 %v340, 96
  %v411 = vpop.permute.xlu0 %410
  %412 = vrot.lane.b32.xlu0 %v341, 96
  %v413 = vpop.permute.xlu0 %412
  %422 = vst.msk [vmem:[%s3] sm:$0xff] %vm36, %v399
  %423 = vst.msk [vmem:[%s3 + $0x8] sm:$0xff] %vm36, %v401
  %424 = vst.msk [vmem:[%s3 + $0x10] sm:$0xff] %vm36, %v403
  %425 = vst.msk [vmem:[%s3 + $0x18] sm:$0xff] %vm36, %v405
  %426 = vst.msk [vmem:[%s3 + $0x20] sm:$0xff] %vm36, %v407
  %427 = vst.msk [vmem:[%s3 + $0x28] sm:$0xff] %vm36, %v409
  %428 = vst.msk [vmem:[%s3 + $0x30] sm:$0xff] %vm36, %v411
  %429 = vst.msk [vmem:[%s3 + $0x38] sm:$0xff] %vm36, %v413
  %438 = vrot.lane.b32.xlu0 %v382, 96
  %v439 = vpop.permute.xlu0 %438
  %440 = vrot.lane.b32.xlu0 %v383, 96
  %v441 = vpop.permute.xlu0 %440
  %442 = vrot.lane.b32.xlu0 %v384, 96
  %v443 = vpop.permute.xlu0 %442
  %444 = vrot.lane.b32.xlu0 %v385, 96
  %v445 = vpop.permute.xlu0 %444
  %446 = vrot.lane.b32.xlu0 %v386, 96
  %v447 = vpop.permute.xlu0 %446
  %448 = vrot.lane.b32.xlu0 %v387, 96
  %v449 = vpop.permute.xlu0 %448
  %450 = vrot.lane.b32.xlu0 %v388, 96
  %v451 = vpop.permute.xlu0 %450
  %452 = vrot.lane.b32.xlu0 %v389, 96
  %v453 = vpop.permute.xlu0 %452
  %462 = vst.msk [vmem:[%s4] sm:$0xff] %vm36, %v439
  %463 = vst.msk [vmem:[%s4 + $0x8] sm:$0xff] %vm36, %v441
  %464 = vst.msk [vmem:[%s4 + $0x10] sm:$0xff] %vm36, %v443
  %465 = vst.msk [vmem:[%s4 + $0x18] sm:$0xff] %vm36, %v445
  %466 = vst.msk [vmem:[%s4 + $0x20] sm:$0xff] %vm36, %v447
  %467 = vst.msk [vmem:[%s4 + $0x28] sm:$0xff] %vm36, %v449
  %468 = vst.msk [vmem:[%s4 + $0x30] sm:$0xff] %vm36, %v451
  %469 = vst.msk [vmem:[%s4 + $0x38] sm:$0xff] %vm36, %v453
  // Predicated region
  $region14: #{adaptive_depth_apply.1} parent=0 // pred_check
    _
  $region15: #{adaptive_depth_apply.1} parent=0 // pred_check_branch
    %471 = sbr.rel (0) target = $region17
  $region16: #{adaptive_depth_apply.1} parent=0 // pred_region
    _
  $region17: #{adaptive_depth_apply.1} parent=0 // pred_fallthru
    _
  // Predicated region
  $region18: #{adaptive_depth_apply.1} parent=0 // pred_check
    _
  $region19: #{adaptive_depth_apply.1} parent=0 // pred_check_branch
    %473 = sbr.rel (0) target = $region21
  $region20: #{adaptive_depth_apply.1} parent=0 // pred_region
    _
  $region21: #{adaptive_depth_apply.1} parent=0 // pred_fallthru
    _
  // Predicated region
  $region22: #{adaptive_depth_apply.1} parent=0 // pred_check
    _
  $region23: #{adaptive_depth_apply.1} parent=0 // pred_check_branch
    %475 = sbr.rel (0) target = $region25
  $region24: #{adaptive_depth_apply.1} parent=0 // pred_region
    _
  $region25: #{adaptive_depth_apply.1} parent=0 // pred_fallthru
    _
  // Predicated region
  $region26: #{adaptive_depth_apply.1} parent=0 // pred_check
    _
  $region27: #{adaptive_depth_apply.1} parent=0 // pred_check_branch
    %477 = sbr.rel (0) target = $region29
  $region28: #{adaptive_depth_apply.1} parent=0 // pred_region
    _
  $region29: #{adaptive_depth_apply.1} parent=0 // pred_fallthru
    _

</llo_original>
